<compile_context>
chip_gen: v7x
topology: tpu7x:2x2x1
jax: 0.10.0
libtpu: 0.0.40
codegen_flags: <defaults>
</compile_context>

<pallas_src>
import functools

import jax
import jax.numpy as jnp
from jax.experimental import pallas as pl
from jax.experimental.pallas import tpu as pltpu


def _round_up(n, m):
    return ((n + m - 1) // m) * m


def _qnet_kernel(x_ref, a_ref, w1x_ref, w1a_ref, b1_ref, w2_ref, b2_ref,
                 w3_ref, b3_ref, out_ref):
    # x_ref: [TB, S] f32, a_ref: [TB, A] f32, out_ref: [1, 1, TB] f32.
    x = x_ref[...].astype(jnp.bfloat16)
    a = a_ref[...].astype(jnp.bfloat16)

    # fc1 + relu.  cat([x, a], 1) @ W1 == x @ W1[:S] + a @ W1[S:] (fused concat).
    # bf16 MXU operands, f32 accumulation.
    h1 = (jnp.dot(x, w1x_ref[...], preferred_element_type=jnp.float32)
          + jnp.dot(a, w1a_ref[...], preferred_element_type=jnp.float32)
          + b1_ref[...])
    h1 = jnp.maximum(h1, 0.0)

    # fc2 + relu (bf16 operands, f32 accumulate).
    h2 = jnp.dot(h1.astype(jnp.bfloat16), w2_ref[...],
                 preferred_element_type=jnp.float32) + b2_ref[...]
    h2 = jnp.maximum(h2, 0.0)

    # fc3 (out_features == 1): VPU multiply + XLU lane reduction (keeps the
    # N=1 matmul off the MXU), then relayout to a lane-dense [1, TB] row so the
    # output store / HBM writeback is full-lane instead of a masked 1-lane vst.
    # (Optional v6e/v7x micro-opt: do the multiply in bf16 — skipped, VALU is
    #  not the bottleneck at these shapes.)
    q = jnp.sum(h2 * w3_ref[...], axis=-1, keepdims=True)        # [TB, 1]
    q = jnp.transpose(q) + b3_ref[...]                           # [1, TB]
    out_ref[...] = q.reshape(out_ref.shape).astype(out_ref.dtype)


def _pick_batch_tile(B, block_batch):
    """Pick the per-step batch tile.

    Small batches: one tile covering the whole batch (no padding).
    Large batches: tile is a multiple of 256 rows, capped at block_batch, and
    chosen so there are >= 2 balanced tiles (v7x has 2 TensorCores and the
    "parallel" grid axis shards across them; harmless on v5e/v6e).
    """
    if B <= 256:
        return B
    block_batch = max(256, _round_up(block_batch, 256))
    tb = min(block_batch, _round_up(pl.cdiv(B, 2), 256))
    return max(256, tb)


def qnetwork_forward(x, a, params, *, block_batch=2048):
    """x: [B, state_dim] f32, a: [B, action_dim] f32. Returns q: [B, 1] f32."""
    w1x, w1a, b1, w2, b2, w3, b3 = params
    B, S = x.shape
    A = a.shape[1]

    TB = _pick_batch_tile(B, block_batch)
    num_tiles = pl.cdiv(B, TB)
    Bp = num_tiles * TB
    if Bp != B:
        pad = Bp - B
        x = jnp.pad(x, ((0, pad), (0, 0)))
        a = jnp.pad(a, ((0, pad), (0, 0)))

    # Weights/biases: whole array, constant block index -> DMA'd once and kept
    # VMEM-resident; single-buffered (the block never changes, so the default
    # double-buffer would just waste VMEM for large hidden_dim).
    def resident(arr):
        return pl.BlockSpec(arr.shape, lambda i: (0, 0),
                            pipeline_mode=pl.Buffered(1))

    out = pl.pallas_call(
        _qnet_kernel,
        out_shape=jax.ShapeDtypeStruct((num_tiles, 1, TB), jnp.float32),
        grid=(num_tiles,),
        in_specs=[
            pl.BlockSpec((TB, S), lambda i: (i, 0)),   # x tile (double-buffered)
            pl.BlockSpec((TB, A), lambda i: (i, 0)),   # a tile (double-buffered)
            resident(w1x), resident(w1a), resident(b1),
            resident(w2), resident(b2),
            resident(w3), resident(b3),
        ],
        # Lane-dense output: one [1, TB] row per grid step.
        out_specs=pl.BlockSpec((1, 1, TB), lambda i: (i, 0, 0)),
        compiler_params=pltpu.CompilerParams(
            dimension_semantics=("parallel",),
            vmem_limit_bytes=64 * 1024 * 1024),
    )(x, a, w1x, w1a, b1, w2, b2, w3, b3)

    # (num_tiles, 1, TB) rows -> (B, 1) column (row tile*TB + j is batch row).
    return out.reshape(Bp, 1)[:B]


def init_qnetwork_params(key, state_dim, action_dim, hidden_dim=256):
    """Init matching nn.Linear defaults (uniform +-1/sqrt(fan_in)).

    Kernel layout:
      * hidden dim is zero-padded to a multiple of 128 lanes (numerically
        exact: padded units get zero weights/biases and zero fc3 weight),
      * w1 is split into w1x [state_dim, Hp] and w1a [action_dim, Hp] (bf16),
      * w2 is [Hp, Hp] bf16, biases are [1, Hp] f32,
      * w3 is a [1, Hp] f32 row (VPU/XLU reduction), b3 is [1, 1] f32.
    """
    in1 = state_dim + action_dim
    Hp = max(128, _round_up(hidden_dim, 128))
    ph = Hp - hidden_dim
    k1, k2, k3, k4, k5, k6 = jax.random.split(key, 6)

    def lin(kw, kb, fan_in, fan_out):
        bound = 1.0 / jnp.sqrt(jnp.float32(fan_in))
        w = jax.random.uniform(kw, (fan_in, fan_out), jnp.float32, -bound, bound)
        b = jax.random.uniform(kb, (1, fan_out), jnp.float32, -bound, bound)
        return w, b

    w1, b1 = lin(k1, k2, in1, hidden_dim)
    w2, b2 = lin(k3, k4, hidden_dim, hidden_dim)
    w3, b3 = lin(k5, k6, hidden_dim, 1)

    # Zero-pad the hidden dimension to Hp lanes.
    w1 = jnp.pad(w1, ((0, 0), (0, ph)))
    b1 = jnp.pad(b1, ((0, 0), (0, ph)))
    w2 = jnp.pad(w2, ((0, ph), (0, ph)))
    b2 = jnp.pad(b2, ((0, 0), (0, ph)))
    w3 = jnp.pad(w3, ((0, ph), (0, 0)))

    w1x = w1[:state_dim].astype(jnp.bfloat16)
    w1a = w1[state_dim:].astype(jnp.bfloat16)
    w2_bf = w2.astype(jnp.bfloat16)
    w3_row = jnp.transpose(w3)            # [1, Hp] f32
    b3 = b3.reshape(1, 1)                 # [1, 1] f32
    return (w1x, w1a, b1, w2_bf, b2, w3_row, b3)


def _reference(x, a, params):
    """Pure-JAX forward of the same math (same bf16-quantized weights)."""
    w1x, w1a, b1, w2, b2, w3, b3 = params
    w1_full = jnp.concatenate([w1x, w1a], axis=0).astype(jnp.float32)
    xa = jnp.concatenate([x, a], axis=1)
    h = jnp.maximum(xa @ w1_full + b1, 0.0)
    h = jnp.maximum(h @ w2.astype(jnp.float32) + b2, 0.0)
    return h @ jnp.transpose(w3) + b3


if __name__ == "__main__":
    key = jax.random.PRNGKey(0)
    kx, ka, kp, kx2, ka2 = jax.random.split(key, 5)

    # Small-shape check (single tile).
    batch, state_dim, action_dim, hidden_dim = 2, 8, 4, 32
    x = jax.random.normal(kx, (batch, state_dim), jnp.float32)
    a = jax.random.normal(ka, (batch, action_dim), jnp.float32)
    params = init_qnetwork_params(kp, state_dim, action_dim, hidden_dim)

    qfwd = jax.jit(functools.partial(qnetwork_forward, block_batch=2048))
    q = qfwd(x, a, params)
    jax.block_until_ready(q)

    ref = _reference(x, a, params)
    assert q.shape == (batch, 1)
    assert jnp.allclose(q, ref, atol=3e-2, rtol=3e-2), (q, ref)

    # Multi-tile check (exercises batch tiling, padding and the lane-dense
    # output relayout; 600 -> 2 tiles of 512 rows).
    batch2 = 600
    x2 = jax.random.normal(kx2, (batch2, state_dim), jnp.float32)
    a2 = jax.random.normal(ka2, (batch2, action_dim), jnp.float32)
    q2 = qfwd(x2, a2, params)
    jax.block_until_ready(q2)
    ref2 = _reference(x2, a2, params)
    assert q2.shape == (batch2, 1)
    assert jnp.allclose(q2, ref2, atol=3e-2, rtol=3e-2)

    print("KERNEL_OK")
</pallas_src>

<mosaic_0001>
module attributes {stable_mosaic.version = 11 : i64} {
  func.func @_qnet_kernel(%arg0: i32, %arg1: memref<2x8xf32, #tpu.memory_space<vmem>>, %arg2: memref<2x4xf32, #tpu.memory_space<vmem>>, %arg3: memref<8x128xbf16, #tpu.memory_space<vmem>>, %arg4: memref<4x128xbf16, #tpu.memory_space<vmem>>, %arg5: memref<1x128xf32, #tpu.memory_space<vmem>>, %arg6: memref<128x128xbf16, #tpu.memory_space<vmem>>, %arg7: memref<1x128xf32, #tpu.memory_space<vmem>>, %arg8: memref<1x128xf32, #tpu.memory_space<vmem>>, %arg9: memref<1x1xf32, #tpu.memory_space<vmem>>, %arg10: memref<1x1x2xf32, #tpu.memory_space<vmem>>) attributes {dimension_semantics = [#tpu.dimension_semantics<parallel>], iteration_bounds = array<i64: 1>, scalar_prefetch = 0 : i64, scratch_operands = 0 : i64, tpu.core_type = #tpu.core_type<tc>, window_params = [{transform_indices = @transform_0, window_bounds = array<i64: 2, 8>}, {transform_indices = @transform_1, window_bounds = array<i64: 2, 4>}, {pipeline_mode = #tpu.pipeline_mode<synchronous>, transform_indices = @transform_2, window_bounds = array<i64: 8, 128>}, {pipeline_mode = #tpu.pipeline_mode<synchronous>, transform_indices = @transform_3, window_bounds = array<i64: 4, 128>}, {pipeline_mode = #tpu.pipeline_mode<synchronous>, transform_indices = @transform_4, window_bounds = array<i64: 1, 128>}, {pipeline_mode = #tpu.pipeline_mode<synchronous>, transform_indices = @transform_5, window_bounds = array<i64: 128, 128>}, {pipeline_mode = #tpu.pipeline_mode<synchronous>, transform_indices = @transform_6, window_bounds = array<i64: 1, 128>}, {pipeline_mode = #tpu.pipeline_mode<synchronous>, transform_indices = @transform_7, window_bounds = array<i64: 1, 128>}, {pipeline_mode = #tpu.pipeline_mode<synchronous>, transform_indices = @transform_8, window_bounds = array<i64: 1, 1>}, {transform_indices = @transform_9, window_bounds = array<i64: 1, 1, 2>}]} {
    %c0 = arith.constant 0 : index
    %c0_0 = arith.constant 0 : index
    %0 = vector.load %arg1[%c0, %c0_0] : memref<2x8xf32, #tpu.memory_space<vmem>>, vector<2x8xf32>
    %1 = arith.truncf %0 : vector<2x8xf32> to vector<2x8xbf16>
    %c0_1 = arith.constant 0 : index
    %c0_2 = arith.constant 0 : index
    %2 = vector.load %arg2[%c0_1, %c0_2] : memref<2x4xf32, #tpu.memory_space<vmem>>, vector<2x4xf32>
    %3 = arith.truncf %2 : vector<2x4xf32> to vector<2x4xbf16>
    %c0_3 = arith.constant 0 : index
    %c0_4 = arith.constant 0 : index
    %4 = vector.load %arg3[%c0_3, %c0_4] : memref<8x128xbf16, #tpu.memory_space<vmem>>, vector<8x128xbf16>
    %cst = arith.constant dense<0.000000e+00> : vector<2x128xf32>
    %5 = tpu.matmul %1, %4, %cst {dimension_numbers = #tpu.dot_dimension_numbers<[1], [0], [0], [1], [0, 0, 1, 1], [], []>} : vector<2x8xbf16>, vector<8x128xbf16>, vector<2x128xf32> -> vector<2x128xf32>
    %c0_5 = arith.constant 0 : index
    %c0_6 = arith.constant 0 : index
    %6 = vector.load %arg4[%c0_5, %c0_6] : memref<4x128xbf16, #tpu.memory_space<vmem>>, vector<4x128xbf16>
    %cst_7 = arith.constant dense<0.000000e+00> : vector<2x128xf32>
    %7 = tpu.matmul %3, %6, %cst_7 {dimension_numbers = #tpu.dot_dimension_numbers<[1], [0], [0], [1], [0, 0, 1, 1], [], []>} : vector<2x4xbf16>, vector<4x128xbf16>, vector<2x128xf32> -> vector<2x128xf32>
    %8 = arith.addf %5, %7 : vector<2x128xf32>
    %c0_8 = arith.constant 0 : index
    %c0_9 = arith.constant 0 : index
    %9 = vector.load %arg5[%c0_8, %c0_9] : memref<1x128xf32, #tpu.memory_space<vmem>>, vector<1x128xf32>
    %10 = vector.broadcast %9 : vector<1x128xf32> to vector<2x128xf32>
    %11 = arith.addf %8, %10 : vector<2x128xf32>
    %cst_10 = arith.constant 0.000000e+00 : f32
    %12 = vector.broadcast %cst_10 : f32 to vector<2x128xf32>
    %13 = arith.maximumf %11, %12 : vector<2x128xf32>
    %14 = arith.truncf %13 : vector<2x128xf32> to vector<2x128xbf16>
    %c0_11 = arith.constant 0 : index
    %c0_12 = arith.constant 0 : index
    %15 = vector.load %arg6[%c0_11, %c0_12] : memref<128x128xbf16, #tpu.memory_space<vmem>>, vector<128x128xbf16>
    %cst_13 = arith.constant dense<0.000000e+00> : vector<2x128xf32>
    %16 = tpu.matmul %14, %15, %cst_13 {dimension_numbers = #tpu.dot_dimension_numbers<[1], [0], [0], [1], [0, 0, 1, 1], [], []>} : vector<2x128xbf16>, vector<128x128xbf16>, vector<2x128xf32> -> vector<2x128xf32>
    %c0_14 = arith.constant 0 : index
    %c0_15 = arith.constant 0 : index
    %17 = vector.load %arg7[%c0_14, %c0_15] : memref<1x128xf32, #tpu.memory_space<vmem>>, vector<1x128xf32>
    %18 = vector.broadcast %17 : vector<1x128xf32> to vector<2x128xf32>
    %19 = arith.addf %16, %18 : vector<2x128xf32>
    %cst_16 = arith.constant 0.000000e+00 : f32
    %20 = vector.broadcast %cst_16 : f32 to vector<2x128xf32>
    %21 = arith.maximumf %19, %20 : vector<2x128xf32>
    %c0_17 = arith.constant 0 : index
    %c0_18 = arith.constant 0 : index
    %22 = vector.load %arg8[%c0_17, %c0_18] : memref<1x128xf32, #tpu.memory_space<vmem>>, vector<1x128xf32>
    %23 = vector.broadcast %22 : vector<1x128xf32> to vector<2x128xf32>
    %24 = arith.mulf %21, %23 : vector<2x128xf32>
    %cst_19 = arith.constant dense<0.000000e+00> : vector<2xf32>
    %25 = vector.multi_reduction <add>, %24, %cst_19 [1] : vector<2x128xf32> to vector<2xf32>
    %26 = vector.shape_cast %25 : vector<2xf32> to vector<2x1xf32>
    %27 = tpu.transpose %26, [1, 0] : vector<2x1xf32> -> vector<1x2xf32>
    %c0_20 = arith.constant 0 : index
    %c0_21 = arith.constant 0 : index
    %28 = vector.load %arg9[%c0_20, %c0_21] : memref<1x1xf32, #tpu.memory_space<vmem>>, vector<1x1xf32>
    %29 = vector.broadcast %28 : vector<1x1xf32> to vector<1x2xf32>
    %30 = arith.addf %27, %29 : vector<1x2xf32>
    %31 = vector.shape_cast %30 : vector<1x2xf32> to vector<1x1x2xf32>
    %c0_22 = arith.constant 0 : index
    %c0_23 = arith.constant 0 : index
    %c0_24 = arith.constant 0 : index
    %32 = vector.load %arg10[%c0_22, %c0_23, %c0_24] : memref<1x1x2xf32, #tpu.memory_space<vmem>>, vector<1x1x2xf32>
    tpu.vector_store %arg10[%c0_22, %c0_23, %c0_24], %31 {strides = array<i32>} : memref<1x1x2xf32, #tpu.memory_space<vmem>>, vector<1x1x2xf32>,
    return
  }
  func.func @transform_0(%arg0: i32) -> (i32, i32) {
    %c0_i32 = arith.constant 0 : i32
    %c0_i32_0 = arith.constant 0 : i32
    return %arg0, %c0_i32 : i32, i32
  }
  func.func @transform_1(%arg0: i32) -> (i32, i32) {
    %c0_i32 = arith.constant 0 : i32
    %c0_i32_0 = arith.constant 0 : i32
    return %arg0, %c0_i32 : i32, i32
  }
  func.func @transform_2(%arg0: i32) -> (i32, i32) {
    %c0_i32 = arith.constant 0 : i32
    %c0_i32_0 = arith.constant 0 : i32
    %c0_i32_1 = arith.constant 0 : i32
    return %c0_i32, %c0_i32_0 : i32, i32
  }
  func.func @transform_3(%arg0: i32) -> (i32, i32) {
    %c0_i32 = arith.constant 0 : i32
    %c0_i32_0 = arith.constant 0 : i32
    %c0_i32_1 = arith.constant 0 : i32
    return %c0_i32, %c0_i32_0 : i32, i32
  }
  func.func @transform_4(%arg0: i32) -> (i32, i32) {
    %c0_i32 = arith.constant 0 : i32
    %c0_i32_0 = arith.constant 0 : i32
    %c0_i32_1 = arith.constant 0 : i32
    return %c0_i32, %c0_i32_0 : i32, i32
  }
  func.func @transform_5(%arg0: i32) -> (i32, i32) {
    %c0_i32 = arith.constant 0 : i32
    %c0_i32_0 = arith.constant 0 : i32
    %c0_i32_1 = arith.constant 0 : i32
    return %c0_i32, %c0_i32_0 : i32, i32
  }
  func.func @transform_6(%arg0: i32) -> (i32, i32) {
    %c0_i32 = arith.constant 0 : i32
    %c0_i32_0 = arith.constant 0 : i32
    %c0_i32_1 = arith.constant 0 : i32
    return %c0_i32, %c0_i32_0 : i32, i32
  }
  func.func @transform_7(%arg0: i32) -> (i32, i32) {
    %c0_i32 = arith.constant 0 : i32
    %c0_i32_0 = arith.constant 0 : i32
    %c0_i32_1 = arith.constant 0 : i32
    return %c0_i32, %c0_i32_0 : i32, i32
  }
  func.func @transform_8(%arg0: i32) -> (i32, i32) {
    %c0_i32 = arith.constant 0 : i32
    %c0_i32_0 = arith.constant 0 : i32
    %c0_i32_1 = arith.constant 0 : i32
    return %c0_i32, %c0_i32_0 : i32, i32
  }
  func.func @transform_9(%arg0: i32) -> (i32, i32, i32) {
    %c0_i32 = arith.constant 0 : i32
    %c0_i32_0 = arith.constant 0 : i32
    %c0_i32_1 = arith.constant 0 : i32
    return %arg0, %c0_i32, %c0_i32_0 : i32, i32, i32
  }
}

</mosaic_0001>

<llo_original>
// kernel: qnetwork_forward.1
$region0: #{qnetwork_forward.1}
  #allocation0 [shape = 'u32[]', space=smem, size = 0x4, offset = 0x4, fixed_abs, tag = 'smem constant byte address 0x4 - core index']
  #allocation1 [shape = 'u32[144,128]{1,0:T(1,128)}', space=vmem, size = 0x12000, scoped, tag = 'internal scratch']
  #allocation2 [shape = 'f32[1,1]{1,0:T(1,128)S(1)}', space=vmem, size = 0x200, scoped, tag = 'scoped memory for qnetwork_forward.1']
  %s0 = inlined_call_operand.hbm [shape: f32[2,8], index: 0, kind: input, shape index: {}]
  %s1 = inlined_call_operand.hbm [shape: f32[2,4], index: 1, kind: input, shape index: {}]
  %s2 = inlined_call_operand.hbm [shape: bf16[8,128], index: 2, kind: input, shape index: {}]
  %s3 = inlined_call_operand.hbm [shape: bf16[4,128], index: 3, kind: input, shape index: {}]
  %s4 = inlined_call_operand.hbm [shape: f32[1,128], index: 4, kind: input, shape index: {}]
  %s5 = inlined_call_operand.hbm [shape: bf16[128,128], index: 5, kind: input, shape index: {}]
  %s6 = inlined_call_operand.hbm [shape: f32[1,128], index: 6, kind: input, shape index: {}]
  %s7 = inlined_call_operand.hbm [shape: f32[1,128], index: 7, kind: input, shape index: {}]
  %s8 = inlined_call_operand.<no memory space> [shape: f32[1,1], index: 8, kind: input, shape index: {}]
  %s9 = inlined_call_operand.hbm [shape: f32[1,1,2], index: 9, kind: output, shape index: {}]
  %s10 = sld [smem:[#allocation0]]
  $region78: #{qnetwork_forward.1} parent=0
    _
  %s12 = ssub.s32 1, %s10
  %s13 = scalar_select 0, %s12, %s10
  %v14 = vstv %s8
  %15 = vst [vmem:[#allocation2] sm:$0x1] %v14
  $region1: #{qnetwork_forward.1} parent=0
    #allocation3 [shape = 'u8[1024]{0}', space=vmem, size = 0x400, scoped, tag = 'input window, operand 0, single buffered']
    #allocation4 [shape = 's32[1]{0}', space=sflag, size = 0x4, scoped, tag = 'scoped memory for qnetwork_forward.1']
    #allocation5 [shape = 's32[1]{0}', space=sflag, size = 0x4, scoped, tag = 'scoped memory for qnetwork_forward.1']
    #allocation6 [shape = 'u8[1024]{0}', space=vmem, size = 0x400, scoped, tag = 'input window, operand 1, single buffered']
    #allocation7 [shape = 's32[1]{0}', space=sflag, size = 0x4, scoped, tag = 'scoped memory for qnetwork_forward.1']
    #allocation8 [shape = 'u8[2048]{0}', space=vmem, size = 0x800, scoped, tag = 'input window, operand 2, single buffered']
    #allocation9 [shape = 'u8[1024]{0}', space=vmem, size = 0x400, scoped, tag = 'input window, operand 3, single buffered']
    #allocation10 [shape = 's32[1]{0}', space=sflag, size = 0x4, scoped, tag = 'scoped memory for qnetwork_forward.1']
    #allocation11 [shape = 'u8[512]{0}', space=vmem, size = 0x400, scoped, tag = 'input window, operand 4, single buffered']
    #allocation12 [shape = 'u8[32768]{0}', space=vmem, size = 0x8000, scoped, tag = 'input window, operand 5, single buffered']
    #allocation13 [shape = 's32[1]{0}', space=sflag, size = 0x4, scoped, tag = 'scoped memory for qnetwork_forward.1']
    #allocation14 [shape = 'u8[512]{0}', space=vmem, size = 0x400, scoped, tag = 'input window, operand 6, single buffered']
    #allocation15 [shape = 'u8[512]{0}', space=vmem, size = 0x400, scoped, tag = 'input window, operand 7, single buffered']
    #allocation16 [shape = 's32[1]{0}', space=sflag, size = 0x4, scoped, tag = 'scoped memory for qnetwork_forward.1']
    #allocation17 [shape = 'u8[512]{0}', space=vmem, size = 0x400, scoped, tag = 'output window, operand 0, single buffered']
    %16 = vsyncpa [#allocation4], 0
    %17 = vsyncpa [#allocation7], 0
    %18 = vsyncpa [#allocation10], 0
    %19 = vsyncpa [#allocation13], 0
    %20 = vsyncpa [#allocation16], 0
    %21 = vsyncpa [#allocation5], 0
    // Predicated region
    $region2: #{qnetwork_forward.1} parent=1 // pred_check
      _
    $region3: #{qnetwork_forward.1} parent=1 // pred_check_branch
      %23 = sbr.rel (0) target = $region5
    $region4: #{qnetwork_forward.1} parent=1 // pred_region
      %s25 = ssub.s32 32, 32
      %26 = vsyncadd [#allocation4], %s25
      %s28 = sshll.u32 [#allocation3], 4
      %s29 = int_to_ptr.vmem [resolvable:$true] %s28
      %31 = dma.hbm_to_vmem [thread:$0]  %s0, 32, %s29, [#allocation4]
    $region5: #{qnetwork_forward.1} parent=1 // pred_fallthru
      _
    // Predicated region
    $region6: #{qnetwork_forward.1} parent=1 // pred_check
      _
    $region7: #{qnetwork_forward.1} parent=1 // pred_check_branch
      %33 = sbr.rel (0) target = $region9
    $region8: #{qnetwork_forward.1} parent=1 // pred_region
      %s35 = ssub.s32 32, 32
      %36 = vsyncadd [#allocation7], %s35
      %s38 = sshll.u32 [#allocation6], 4
      %s39 = int_to_ptr.vmem [resolvable:$true] %s38
      %41 = dma.hbm_to_vmem [thread:$0]  %s1, 32, %s39, [#allocation7]
    $region9: #{qnetwork_forward.1} parent=1 // pred_fallthru
      _
    // Predicated region
    $region10: #{qnetwork_forward.1} parent=1 // pred_check
      _
    $region11: #{qnetwork_forward.1} parent=1 // pred_check_branch
      %43 = sbr.rel (0) target = $region13
    $region12: #{qnetwork_forward.1} parent=1 // pred_region
      %s45 = ssub.s32 64, 64
      %46 = vsyncadd [#allocation7], %s45
      %s48 = sshll.u32 [#allocation8], 4
      %s49 = int_to_ptr.vmem [resolvable:$true] %s48
      %51 = dma.hbm_to_vmem [thread:$0]  %s2, 64, %s49, [#allocation7]
    $region13: #{qnetwork_forward.1} parent=1 // pred_fallthru
      _
    // Predicated region
    $region14: #{qnetwork_forward.1} parent=1 // pred_check
      _
    $region15: #{qnetwork_forward.1} parent=1 // pred_check_branch
      %53 = sbr.rel (0) target = $region17
    $region16: #{qnetwork_forward.1} parent=1 // pred_region
      %s55 = ssub.s32 32, 32
      %56 = vsyncadd [#allocation10], %s55
      %s58 = sshll.u32 [#allocation9], 4
      %s59 = int_to_ptr.vmem [resolvable:$true] %s58
      %61 = dma.hbm_to_vmem [thread:$0]  %s3, 32, %s59, [#allocation10]
    $region17: #{qnetwork_forward.1} parent=1 // pred_fallthru
      _
    // Predicated region
    $region18: #{qnetwork_forward.1} parent=1 // pred_check
      _
    $region19: #{qnetwork_forward.1} parent=1 // pred_check_branch
      %63 = sbr.rel (0) target = $region21
    $region20: #{qnetwork_forward.1} parent=1 // pred_region
      %s65 = ssub.s32 16, 16
      %66 = vsyncadd [#allocation10], %s65
      %s68 = sshll.u32 [#allocation11], 4
      %s69 = int_to_ptr.vmem [resolvable:$true] %s68
      %71 = dma.hbm_to_vmem [thread:$0]  %s4, 16, %s69, [#allocation10]
    $region21: #{qnetwork_forward.1} parent=1 // pred_fallthru
      _
    // Predicated region
    $region22: #{qnetwork_forward.1} parent=1 // pred_check
      _
    $region23: #{qnetwork_forward.1} parent=1 // pred_check_branch
      %73 = sbr.rel (0) target = $region25
    $region24: #{qnetwork_forward.1} parent=1 // pred_region
      %s75 = ssub.s32 1024, 1024
      %76 = vsyncadd [#allocation13], %s75
      %s77 = sshll.u32 [#allocation12], 4
      %s78 = int_to_ptr.vmem [resolvable:$true] %s77
      %83 = dma.hbm_to_vmem [thread:$0]  %s5, 1024, %s78, [#allocation13], 64, 64, 4
    $region25: #{qnetwork_forward.1} parent=1 // pred_fallthru
      _
    // Predicated region
    $region26: #{qnetwork_forward.1} parent=1 // pred_check
      _
    $region27: #{qnetwork_forward.1} parent=1 // pred_check_branch
      %85 = sbr.rel (0) target = $region29
    $region28: #{qnetwork_forward.1} parent=1 // pred_region
      %s87 = ssub.s32 16, 16
      %88 = vsyncadd [#allocation13], %s87
      %s90 = sshll.u32 [#allocation14], 4
      %s91 = int_to_ptr.vmem [resolvable:$true] %s90
      %93 = dma.hbm_to_vmem [thread:$0]  %s6, 16, %s91, [#allocation13]
    $region29: #{qnetwork_forward.1} parent=1 // pred_fallthru
      _
    // Predicated region
    $region30: #{qnetwork_forward.1} parent=1 // pred_check
      _
    $region31: #{qnetwork_forward.1} parent=1 // pred_check_branch
      %95 = sbr.rel (0) target = $region33
    $region32: #{qnetwork_forward.1} parent=1 // pred_region
      %s97 = ssub.s32 16, 16
      %98 = vsyncadd [#allocation16], %s97
      %s100 = sshll.u32 [#allocation15], 4
      %s101 = int_to_ptr.vmem [resolvable:$true] %s100
      %103 = dma.hbm_to_vmem [thread:$0]  %s7, 16, %s101, [#allocation16]
    $region33: #{qnetwork_forward.1} parent=1 // pred_fallthru
      _
    // Predicated region
    $region34: #{qnetwork_forward.1} parent=1 // pred_check
      _
    $region35: #{qnetwork_forward.1} parent=1 // pred_check_branch
      %105 = sbr.rel (0) target = $region37
    $region36: #{qnetwork_forward.1} parent=1 // pred_region
      _
    $region37: #{qnetwork_forward.1} parent=1 // pred_fallthru
      _
    // Predicated region
    $region38: #{qnetwork_forward.1} parent=1 // pred_check
      _
    $region39: #{qnetwork_forward.1} parent=1 // pred_check_branch
      %107 = sbr.rel (0) target = $region41
    $region40: #{qnetwork_forward.1} parent=1 // pred_region
      %108 = dma.done [#allocation4], 32
    $region41: #{qnetwork_forward.1} parent=1 // pred_fallthru
      _
    // Predicated region
    $region42: #{qnetwork_forward.1} parent=1 // pred_check
      _
    $region43: #{qnetwork_forward.1} parent=1 // pred_check_branch
      %110 = sbr.rel (0) target = $region45
    $region44: #{qnetwork_forward.1} parent=1 // pred_region
      %111 = dma.done [#allocation7], 32
    $region45: #{qnetwork_forward.1} parent=1 // pred_fallthru
      _
    // Predicated region
    $region46: #{qnetwork_forward.1} parent=1 // pred_check
      _
    $region47: #{qnetwork_forward.1} parent=1 // pred_check_branch
      %113 = sbr.rel (0) target = $region49
    $region48: #{qnetwork_forward.1} parent=1 // pred_region
      %114 = dma.done [#allocation7], 64
    $region49: #{qnetwork_forward.1} parent=1 // pred_fallthru
      _
    // Predicated region
    $region50: #{qnetwork_forward.1} parent=1 // pred_check
      _
    $region51: #{qnetwork_forward.1} parent=1 // pred_check_branch
      %116 = sbr.rel (0) target = $region53
    $region52: #{qnetwork_forward.1} parent=1 // pred_region
      %117 = dma.done [#allocation10], 32
    $region53: #{qnetwork_forward.1} parent=1 // pred_fallthru
      _
    // Predicated region
    $region54: #{qnetwork_forward.1} parent=1 // pred_check
      _
    $region55: #{qnetwork_forward.1} parent=1 // pred_check_branch
      %119 = sbr.rel (0) target = $region57
    $region56: #{qnetwork_forward.1} parent=1 // pred_region
      %120 = dma.done [#allocation10], 16
    $region57: #{qnetwork_forward.1} parent=1 // pred_fallthru
      _
    // Predicated region
    $region58: #{qnetwork_forward.1} parent=1 // pred_check
      _
    $region59: #{qnetwork_forward.1} parent=1 // pred_check_branch
      %122 = sbr.rel (0) target = $region61
    $region60: #{qnetwork_forward.1} parent=1 // pred_region
      %123 = dma.done [#allocation13], 1024
    $region61: #{qnetwork_forward.1} parent=1 // pred_fallthru
      _
    // Predicated region
    $region62: #{qnetwork_forward.1} parent=1 // pred_check
      _
    $region63: #{qnetwork_forward.1} parent=1 // pred_check_branch
      %125 = sbr.rel (0) target = $region65
    $region64: #{qnetwork_forward.1} parent=1 // pred_region
      %126 = dma.done [#allocation13], 16
    $region65: #{qnetwork_forward.1} parent=1 // pred_fallthru
      _
    // Predicated region
    $region66: #{qnetwork_forward.1} parent=1 // pred_check
      _
    $region67: #{qnetwork_forward.1} parent=1 // pred_check_branch
      %128 = sbr.rel (0) target = $region69
    $region68: #{qnetwork_forward.1} parent=1 // pred_region
      %129 = dma.done [#allocation16], 16
    $region69: #{qnetwork_forward.1} parent=1 // pred_fallthru
      _
    %v131 = vld [vmem:[#allocation3] sm:$0x3]
    %v132 = vpack.c.bf16 %v131, %v131
    %v133 = vld [vmem:[#allocation6] sm:$0x3]
    %v134 = vpack.c.bf16 %v133, %v133
    %v135 = vld [vmem:[#allocation8] sm:$0xf]
    %v136 = vld [vmem:[#allocation9] sm:$0x3]
    %vm137 = vcmask 31744
    %v139 = vsel %vm137, %v134, 0
    %vm141 = vcmask 1041408
    %v143 = vsel %vm141, %v136, 0
    %145 = vmatprep.subr.bf16.mxu0 0
    %146 = vmatpush1.bf16.msra.mxu0 %v143
    %147 = vmatprep.subr.bf16.mxu0 0
    %148 = vmatpush1.bf16.msra.mxu0 0
    %149 = vmatprep.subr.bf16.mxu0 0
    %150 = vmatpush1.bf16.msra.mxu0 0
    %151 = vmatprep.subr.bf16.mxu0 0
    %152 = vmatpush1.bf16.msra.mxu0 0
    %153 = vmatprep.subr.bf16.mxu0 0
    %154 = vmatpush1.bf16.msra.mxu0 0
    %155 = vmatprep.subr.bf16.mxu0 0
    %156 = vmatpush1.bf16.msra.mxu0 0
    %157 = vmatprep.subr.bf16.mxu0 0
    %158 = vmatpush1.bf16.msra.mxu0 0
    %159 = vmatprep.subr.bf16.mxu0 0
    %160 = vmatpush1.bf16.msra.mxu0 0
    %161 = vmatprep.subr.bf16.mxu0 0
    %162 = vmatpush1.bf16.msra.mxu0 0
    %163 = vmatprep.subr.bf16.mxu0 0
    %164 = vmatpush1.bf16.msra.mxu0 0
    %165 = vmatprep.subr.bf16.mxu0 0
    %166 = vmatpush1.bf16.msra.mxu0 0
    %167 = vmatprep.subr.bf16.mxu0 0
    %168 = vmatpush1.bf16.msra.mxu0 0
    %169 = vmatprep.subr.bf16.mxu0 0
    %170 = vmatpush1.bf16.msra.mxu0 0
    %171 = vmatprep.subr.bf16.mxu0 0
    %172 = vmatpush1.bf16.msra.mxu0 0
    %173 = vmatprep.subr.bf16.mxu0 0
    %174 = vmatpush1.bf16.msra.mxu0 0
    %175 = vmatprep.subr.bf16.mxu0 0
    %176 = vmatpush1.bf16.msra.mxu0 0
    %177 = vmatprep.mubr.bf16.mxu0 0
    %178 = vmatmul.mubr.bf16.gmra.mrb[0].mxu0 %v139
    %v179 = vpop.f32.mrb[0].mxu0
    %v180 = vadd.f32 0.0, %v179
    %v181 = vpop.f32.mrb[0].mxu0
    %v182 = vpop.f32.mrb[0].mxu0
    %v183 = vpop.f32.mrb[0].mxu0
    %184 = vdwg.mxu0
    %vm185 = vcmask 64512
    %v187 = vsel %vm185, %v132, 0
    %vm189 = vcmask 1043456
    %v191 = vsel %vm189, %v135, 0
    %193 = vmatprep.subr.bf16.mxu0 0
    %194 = vmatpush1.bf16.msra.mxu0 %v191
    %195 = vmatprep.subr.bf16.mxu0 0
    %196 = vmatpush1.bf16.msra.mxu0 0
    %197 = vmatprep.subr.bf16.mxu0 0
    %198 = vmatpush1.bf16.msra.mxu0 0
    %199 = vmatprep.subr.bf16.mxu0 0
    %200 = vmatpush1.bf16.msra.mxu0 0
    %201 = vmatprep.subr.bf16.mxu0 0
    %202 = vmatpush1.bf16.msra.mxu0 0
    %203 = vmatprep.subr.bf16.mxu0 0
    %204 = vmatpush1.bf16.msra.mxu0 0
    %205 = vmatprep.subr.bf16.mxu0 0
    %206 = vmatpush1.bf16.msra.mxu0 0
    %207 = vmatprep.subr.bf16.mxu0 0
    %208 = vmatpush1.bf16.msra.mxu0 0
    %209 = vmatprep.subr.bf16.mxu0 0
    %210 = vmatpush1.bf16.msra.mxu0 0
    %211 = vmatprep.subr.bf16.mxu0 0
    %212 = vmatpush1.bf16.msra.mxu0 0
    %213 = vmatprep.subr.bf16.mxu0 0
    %214 = vmatpush1.bf16.msra.mxu0 0
    %215 = vmatprep.subr.bf16.mxu0 0
    %216 = vmatpush1.bf16.msra.mxu0 0
    %217 = vmatprep.subr.bf16.mxu0 0
    %218 = vmatpush1.bf16.msra.mxu0 0
    %219 = vmatprep.subr.bf16.mxu0 0
    %220 = vmatpush1.bf16.msra.mxu0 0
    %221 = vmatprep.subr.bf16.mxu0 0
    %222 = vmatpush1.bf16.msra.mxu0 0
    %223 = vmatprep.subr.bf16.mxu0 0
    %224 = vmatpush1.bf16.msra.mxu0 0
    %225 = vmatprep.mubr.bf16.mxu0 0
    %226 = vmatmul.mubr.bf16.gmra.mrb[0].mxu0 %v187
    %v227 = vpop.f32.mrb[0].mxu0
    %v228 = vadd.f32 %v180, %v227
    %v229 = vpop.f32.mrb[0].mxu0
    %v230 = vpop.f32.mrb[0].mxu0
    %v231 = vpop.f32.mrb[0].mxu0
    %232 = vdwg.mxu0
    %v233 = vld [vmem:[#allocation11] sm:$0x1]
    %v235 = vlaneseq
    %v236 = vshrl.u32 %v235, 7
    %v237 = vsub.s32 0, %v236
    %v238 = vrot.slane %v233, %v237
    %v240 = vadd.f32 %v228, %v238
    %v241 = vmax.f32 %v240, 0.0
    %v242 = vpack.c.bf16 %v241, %v241
    %v243 = vld [vmem:[#allocation12] sm:$0xf]
    %v244 = vld [vmem:[#allocation12 + $0x4] sm:$0xf]
    %v245 = vld [vmem:[#allocation12 + $0x8] sm:$0xf]
    %v246 = vld [vmem:[#allocation12 + $0xc] sm:$0xf]
    %v247 = vld [vmem:[#allocation12 + $0x10] sm:$0xf]
    %v248 = vld [vmem:[#allocation12 + $0x14] sm:$0xf]
    %v249 = vld [vmem:[#allocation12 + $0x18] sm:$0xf]
    %v250 = vld [vmem:[#allocation12 + $0x1c] sm:$0xf]
    %v251 = vld [vmem:[#allocation12 + $0x20] sm:$0xf]
    %v252 = vld [vmem:[#allocation12 + $0x24] sm:$0xf]
    %v253 = vld [vmem:[#allocation12 + $0x28] sm:$0xf]
    %v254 = vld [vmem:[#allocation12 + $0x2c] sm:$0xf]
    %v255 = vld [vmem:[#allocation12 + $0x30] sm:$0xf]
    %v256 = vld [vmem:[#allocation12 + $0x34] sm:$0xf]
    %v257 = vld [vmem:[#allocation12 + $0x38] sm:$0xf]
    %v258 = vld [vmem:[#allocation12 + $0x3c] sm:$0xf]
    %v259 = vld [vmem:[#allocation14] sm:$0x1]
    %v261 = vlaneseq
    %v262 = vshrl.u32 %v261, 7
    %v263 = vsub.s32 0, %v262
    %v264 = vrot.slane %v259, %v263
    %v282 = vunpack.c.l.b16 %v243
    %v283 = vunpack.c.l.b16 %v244
    %v284 = vunpack.c.l.b16 %v245
    %v285 = vunpack.c.l.b16 %v246
    %v286 = vunpack.c.l.b16 %v247
    %v287 = vunpack.c.l.b16 %v248
    %v288 = vunpack.c.l.b16 %v249
    %v289 = vunpack.c.l.b16 %v250
    %v290 = vunpack.c.l.b16 %v251
    %v291 = vunpack.c.l.b16 %v252
    %v292 = vunpack.c.l.b16 %v253
    %v293 = vunpack.c.l.b16 %v254
    %v294 = vunpack.c.l.b16 %v255
    %v295 = vunpack.c.l.b16 %v256
    %v296 = vunpack.c.l.b16 %v257
    %v297 = vunpack.c.l.b16 %v258
    %v298 = vpack.c.b16 %v283, %v282
    %v299 = vpack.c.b16 %v285, %v284
    %v300 = vpack.c.b16 %v287, %v286
    %v301 = vpack.c.b16 %v289, %v288
    %v302 = vpack.c.b16 %v291, %v290
    %v303 = vpack.c.b16 %v293, %v292
    %v304 = vpack.c.b16 %v295, %v294
    %v305 = vpack.c.b16 %v297, %v296
    %314 = vmatprep.subr.bf16.mxu0 0
    %315 = vmatpush1.bf16.msra.mxu0 %v298
    %316 = vmatprep.subr.bf16.mxu0 0
    %317 = vmatpush1.bf16.msra.mxu0 %v299
    %318 = vmatprep.subr.bf16.mxu0 0
    %319 = vmatpush1.bf16.msra.mxu0 %v300
    %320 = vmatprep.subr.bf16.mxu0 0
    %321 = vmatpush1.bf16.msra.mxu0 %v301
    %322 = vmatprep.subr.bf16.mxu0 0
    %323 = vmatpush1.bf16.msra.mxu0 %v302
    %324 = vmatprep.subr.bf16.mxu0 0
    %325 = vmatpush1.bf16.msra.mxu0 %v303
    %326 = vmatprep.subr.bf16.mxu0 0
    %327 = vmatpush1.bf16.msra.mxu0 %v304
    %328 = vmatprep.subr.bf16.mxu0 0
    %329 = vmatpush1.bf16.msra.mxu0 %v305
    %330 = vmatprep.subr.bf16.mxu0 0
    %331 = vmatpush1.bf16.msra.mxu0 0
    %332 = vmatprep.subr.bf16.mxu0 0
    %333 = vmatpush1.bf16.msra.mxu0 0
    %334 = vmatprep.subr.bf16.mxu0 0
    %335 = vmatpush1.bf16.msra.mxu0 0
    %336 = vmatprep.subr.bf16.mxu0 0
    %337 = vmatpush1.bf16.msra.mxu0 0
    %338 = vmatprep.subr.bf16.mxu0 0
    %339 = vmatpush1.bf16.msra.mxu0 0
    %340 = vmatprep.subr.bf16.mxu0 0
    %341 = vmatpush1.bf16.msra.mxu0 0
    %342 = vmatprep.subr.bf16.mxu0 0
    %343 = vmatpush1.bf16.msra.mxu0 0
    %344 = vmatprep.subr.bf16.mxu0 0
    %345 = vmatpush1.bf16.msra.mxu0 0
    %346 = vmatprep.mubr.bf16.mxu0 0
    %347 = vmatmul.mubr.bf16.gmra.mrb[0].mxu0 %v242
    %v348 = vpop.f32.mrb[0].mxu0
    %v349 = vadd.f32 %v264, %v348
    %v350 = vpop.f32.mrb[0].mxu0
    %v351 = vpop.f32.mrb[0].mxu0
    %v352 = vpop.f32.mrb[0].mxu0
    %353 = vdwg.mxu0
    %v354 = vmax.f32 %v349, 0.0
    %v355 = vld [vmem:[#allocation15] sm:$0x1]
    %v357 = vlaneseq
    %v358 = vshrl.u32 %v357, 7
    %v359 = vsub.s32 0, %v358
    %v360 = vrot.slane %v355, %v359
    %v362 = vmul.f32 %v354, %v360
    %v363 = vsel %vm141, %v362, 0.0
    %364 = vadd.xlane.f32.xlu0 %v363
    %v365 = vpop.xlane.xlu0 %364
    %366 = vxpose.xlu0.b32.start [1/16] %v365, 128
    %367 = vxpose.xlu0.b32.cont [2/16] 0.0, 128
    %368 = vxpose.xlu0.b32.cont [3/16] 0.0, 128
    %369 = vxpose.xlu0.b32.cont [4/16] 0.0, 128
    %370 = vxpose.xlu0.b32.cont [5/16] 0.0, 128
    %371 = vxpose.xlu0.b32.cont [6/16] 0.0, 128
    %372 = vxpose.xlu0.b32.cont [7/16] 0.0, 128
    %373 = vxpose.xlu0.b32.cont [8/16] 0.0, 128
    %374 = vxpose.xlu0.b32.cont [9/16] 0.0, 128
    %375 = vxpose.xlu0.b32.cont [10/16] 0.0, 128
    %376 = vxpose.xlu0.b32.cont [11/16] 0.0, 128
    %377 = vxpose.xlu0.b32.cont [12/16] 0.0, 128
    %378 = vxpose.xlu0.b32.cont [13/16] 0.0, 128
    %379 = vxpose.xlu0.b32.cont [14/16] 0.0, 128
    %380 = vxpose.xlu0.b32.cont [15/16] 0.0, 128
    %381 = vxpose.xlu0.b32.end [16/16] 0.0, 128
    %v382 = vpop.trf.xlu0
    %v383 = vpop.trf.xlu0
    %v384 = vpop.trf.xlu0
    %v385 = vpop.trf.xlu0
    %v386 = vpop.trf.xlu0
    %v387 = vpop.trf.xlu0
    %v388 = vpop.trf.xlu0
    %v389 = vpop.trf.xlu0
    %v390 = vpop.trf.xlu0
    %v391 = vpop.trf.xlu0
    %v392 = vpop.trf.xlu0
    %v393 = vpop.trf.xlu0
    %v394 = vpop.trf.xlu0
    %v395 = vpop.trf.xlu0
    %v396 = vpop.trf.xlu0
    %v397 = vpop.trf.xlu0
    %v398 = vld [vmem:[#allocation2] sm:$0x1]
    %400 = vset.pattern.permute.xlu0 0
    %401 = vperm.xlu0 %400, %v398
    %v402 = vpop.permute.xlu0 %401
    %v404 = vlaneseq
    %v405 = vshrl.u32 %v404, 7
    %v406 = vsub.s32 0, %v405
    %v407 = vrot.slane %v402, %v406
    %v408 = vadd.f32 %v382, %v407
    %vm409 = vcmask 8192
    %410 = vst.msk [vmem:[#allocation17] sm:$0x1] %vm409, %v408
    // Predicated region
    $region70: #{qnetwork_forward.1} parent=1 // pred_check
      _
    $region71: #{qnetwork_forward.1} parent=1 // pred_check_branch
      %412 = sbr.rel (0) target = $region73
    $region72: #{qnetwork_forward.1} parent=1 // pred_region
      %s414 = ssub.s32 16, 16
      %415 = vsyncadd [#allocation5], %s414
      %s417 = sshll.u32 [#allocation17], 4
      %s418 = int_to_ptr.vmem [resolvable:$true] %s417
      %420 = dma.vmem_to_hbm [thread:$0]  %s418, 16, %s9, [#allocation5]
    $region73: #{qnetwork_forward.1} parent=1 // pred_fallthru
      _
    // Predicated region
    $region74: #{qnetwork_forward.1} parent=1 // pred_check
      _
    $region75: #{qnetwork_forward.1} parent=1 // pred_check_branch
      %422 = sbr.rel (0) target = $region77
    $region76: #{qnetwork_forward.1} parent=1 // pred_region
      %423 = dma.done [#allocation5], 16
    $region77: #{qnetwork_forward.1} parent=1 // pred_fallthru
      _
    %424 = vsyncpa [#allocation4], 1
    %425 = vsyncpa [#allocation7], 1
    %426 = vsyncpa [#allocation10], 1
    %427 = vsyncpa [#allocation13], 1
    %428 = vsyncpa [#allocation16], 1
    %429 = vsyncpa [#allocation5], 1

</llo_original>
